<compile_context>
chip_gen: v7x
topology: tpu7x:2x2x1
jax: 0.10.0
libtpu: 0.0.40
codegen_flags: <defaults>
</compile_context>

<pallas_src>
import math

import jax
import jax.numpy as jnp
from jax.experimental import pallas as pl
from jax.experimental.pallas import tpu as pltpu

_LANES = 128


def _normalize_kernel(inv_std_ref, bias_ref, x_ref, o_ref):
    # inv_std_ref / bias_ref are scalar-prefetch SMEM arrays of shape (C,).
    c = pl.program_id(0)
    inv_s = inv_std_ref[c]
    b = bias_ref[c]
    o_ref[...] = (x_ref[...] * inv_s + b).astype(o_ref.dtype)


def _default_tile_m():
    """Generation-sized row-tile: ~512 KiB f32 block (1–2 MiB on v7x)."""
    try:
        kind = jax.devices()[0].device_kind.lower()
    except Exception:  # pragma: no cover - defensive
        kind = ""
    if "v7" in kind:
        return 2048
    return 1024


def normalize_pallas(x, mean, std, tile_m=None):
    """x: (C, T, H, W) float32; mean/std: length-C sequences of floats."""
    C = x.shape[0]
    N = math.prod(x.shape[1:])

    if tile_m is None:
        tile_m = _default_tile_m()

    # Rows of 128 lanes needed to cover the flattened trailing dims.
    M = pl.cdiv(N, _LANES)
    # Keep the sublane dim (8, 128)-aligned and never larger than the data.
    tile_m = min(tile_m, pl.cdiv(M, 8) * 8)
    tile_m = max(8, (tile_m // 8) * 8)

    # Pad the flattened dim so it is an exact multiple of tile_m * 128.
    m_pad = pl.cdiv(M, tile_m) * tile_m
    n_pad = m_pad * _LANES

    x_flat = x.reshape(C, N)
    if n_pad != N:
        x_flat = jnp.pad(x_flat, ((0, 0), (0, n_pad - N)))
    x2 = x_flat.reshape(C, m_pad, _LANES)

    mean_arr = jnp.asarray(mean, dtype=jnp.float32)
    std_arr = jnp.asarray(std, dtype=jnp.float32)
    inv_std = 1.0 / std_arr
    bias = -mean_arr * inv_std

    num_tiles = m_pad // tile_m

    grid_spec = pltpu.PrefetchScalarGridSpec(
        num_scalar_prefetch=2,
        grid=(C, num_tiles),
        in_specs=[
            pl.BlockSpec((1, tile_m, _LANES), lambda c, t, inv, b: (c, t, 0)),
        ],
        out_specs=pl.BlockSpec((1, tile_m, _LANES), lambda c, t, inv, b: (c, t, 0)),
    )

    out = pl.pallas_call(
        _normalize_kernel,
        out_shape=jax.ShapeDtypeStruct((C, m_pad, _LANES), x.dtype),
        grid_spec=grid_spec,
        compiler_params=pltpu.CompilerParams(
            dimension_semantics=("parallel", "parallel")
        ),
    )(inv_std, bias, x2)

    out_flat = out.reshape(C, n_pad)
    if n_pad != N:
        out_flat = out_flat[:, :N]
    return out_flat.reshape(x.shape)


if __name__ == "__main__":
    # Deterministic example input: (C, T, H, W) video tensor.
    key = jax.random.PRNGKey(0)
    C, T, H, W = 3, 8, 16, 16
    x = jax.random.uniform(key, (C, T, H, W), dtype=jnp.float32)

    # Standard ImageNet-style per-channel statistics (module __init__ args).
    mean = (0.485, 0.456, 0.406)
    std = (0.229, 0.224, 0.225)

    out = normalize_pallas(x, mean, std)
    out = jax.block_until_ready(out)

    # Sanity check against pure-JAX reference.
    mean_b = jnp.asarray(mean, jnp.float32)[:, None, None, None]
    std_b = jnp.asarray(std, jnp.float32)[:, None, None, None]
    ref = (x - mean_b) / std_b
    assert out.shape == (C, T, H, W)
    assert jnp.allclose(out, ref, atol=1e-5, rtol=1e-5)

    print("KERNEL_OK")
</pallas_src>

<mosaic_0001>
module attributes {stable_mosaic.version = 11 : i64} {
  func.func @_normalize_kernel(%arg0: i32, %arg1: i32, %arg2: memref<3xf32, #tpu.memory_space<smem>>, %arg3: memref<3xf32, #tpu.memory_space<smem>>, %arg4: memref<1x16x128xf32, #tpu.memory_space<vmem>>, %arg5: memref<1x16x128xf32, #tpu.memory_space<vmem>>) attributes {dimension_semantics = [#tpu.dimension_semantics<parallel>, #tpu.dimension_semantics<parallel>], iteration_bounds = array<i64: 3, 1>, scalar_prefetch = 2 : i64, scratch_operands = 0 : i64, tpu.core_type = #tpu.core_type<tc>, window_params = [{transform_indices = @transform_0, window_bounds = array<i64: 1, 16, 128>}, {transform_indices = @transform_1, window_bounds = array<i64: 1, 16, 128>}]} {
    %0 = arith.index_cast %arg0 : i32 to index
    %1 = memref.load %arg2[%0] : memref<3xf32, #tpu.memory_space<smem>>
    %2 = arith.index_cast %arg0 : i32 to index
    %3 = memref.load %arg3[%2] : memref<3xf32, #tpu.memory_space<smem>>
    %c0 = arith.constant 0 : index
    %c0_0 = arith.constant 0 : index
    %c0_1 = arith.constant 0 : index
    %4 = vector.load %arg4[%c0, %c0_0, %c0_1] : memref<1x16x128xf32, #tpu.memory_space<vmem>>, vector<1x16x128xf32>
    %5 = vector.broadcast %1 : f32 to vector<1x16x128xf32>
    %6 = arith.mulf %4, %5 : vector<1x16x128xf32>
    %7 = vector.broadcast %3 : f32 to vector<1x16x128xf32>
    %8 = arith.addf %6, %7 : vector<1x16x128xf32>
    %c0_2 = arith.constant 0 : index
    %c0_3 = arith.constant 0 : index
    %c0_4 = arith.constant 0 : index
    %9 = vector.load %arg5[%c0_2, %c0_3, %c0_4] : memref<1x16x128xf32, #tpu.memory_space<vmem>>, vector<1x16x128xf32>
    tpu.vector_store %arg5[%c0_2, %c0_3, %c0_4], %8 {strides = array<i32>} : memref<1x16x128xf32, #tpu.memory_space<vmem>>, vector<1x16x128xf32>,
    return
  }
  func.func @transform_0(%arg0: i32, %arg1: i32, %arg2: memref<3xf32, #tpu.memory_space<smem>>, %arg3: memref<3xf32, #tpu.memory_space<smem>>) -> (i32, i32, i32) {
    %c0_i32 = arith.constant 0 : i32
    %c0_i32_0 = arith.constant 0 : i32
    return %arg0, %arg1, %c0_i32 : i32, i32, i32
  }
  func.func @transform_1(%arg0: i32, %arg1: i32, %arg2: memref<3xf32, #tpu.memory_space<smem>>, %arg3: memref<3xf32, #tpu.memory_space<smem>>) -> (i32, i32, i32) {
    %c0_i32 = arith.constant 0 : i32
    %c0_i32_0 = arith.constant 0 : i32
    return %arg0, %arg1, %c0_i32 : i32, i32, i32
  }
}

</mosaic_0001>

<llo_original>
// kernel: tpu_custom_call.1
$region0: #{tpu_custom_call.1}
  #allocation0 [shape = 'u32[]', space=smem, size = 0x4, offset = 0x4, fixed_abs, tag = 'smem constant byte address 0x4 - core index']
  #allocation1 [shape = 'u32[144,128]{1,0:T(1,128)}', space=vmem, size = 0x12000, scoped, tag = 'internal scratch']
  #allocation2 [shape = 's32[1]{0}', space=sflag, size = 0x4, scoped, tag = 'scoped memory for tpu_custom_call.1']
  #allocation3 [shape = 'u8[512]{0}', space=smem, size = 0x200, scoped, tag = 'prefetched SMEM operand 0']
  #allocation4 [shape = 'u8[512]{0}', space=smem, size = 0x200, scoped, tag = 'prefetched SMEM operand 1']
  %s0 = inlined_call_operand.hbm [shape: f32[3], index: 0, kind: input, shape index: {}]
  %s1 = inlined_call_operand.vmem [shape: f32[3], index: 1, kind: input, shape index: {}]
  %s2 = inlined_call_operand.hbm [shape: f32[3,16,128], index: 2, kind: input, shape index: {}]
  %s3 = inlined_call_operand.hbm [shape: f32[3,16,128], index: 3, kind: output, shape index: {}]
  %s4 = sld [smem:[#allocation0]]
  $region41: #{tpu_custom_call.1} parent=0
    _
  %s6 = ssub.s32 1, %s4
  %s7 = scalar_select 0, %s6, %s4
  %9 = dma.hbm_to_smem %s0, 16, [#allocation3], [#allocation2]
  %s10 = sshll.u32 %s1, 4
  %s11 = int_to_ptr.vmem [resolvable:$true] %s10
  %13 = dma.vmem_to_smem %s11, 16, [#allocation4], [#allocation2]
  %14 = dma.done [#allocation2], 32
  %15 = sfence
  $region1: #{tpu_custom_call.1} parent=0
    #allocation5 [shape = 'u8[16384]{0}', space=vmem, size = 0x4000, scoped, tag = 'input window, operand 2']
    #allocation6 [shape = 's32[2]{0}', space=sflag, size = 0x8, scoped, tag = 'scoped memory for tpu_custom_call.1']
    #allocation7 [shape = 's32[2]{0}', space=sflag, size = 0x8, scoped, tag = 'scoped memory for tpu_custom_call.1']
    #allocation8 [shape = 'u8[16384]{0}', space=vmem, size = 0x4000, scoped, tag = 'output window, operand 0']
    %16 = vsyncpa [#allocation6], 0
    %s17 = scalar_lea.sflag [#allocation6], 1
    %18 = vsyncpa %s17, 0
    %19 = vsyncpa [#allocation7], 0
    %s20 = scalar_lea.sflag [#allocation7], 1
    %21 = vsyncpa %s20, 0
    loop: start=0, step=1, limit=5
    $region2: #{tpu_custom_call.1} parent=1 // loop_pre_header
      _
    $region3: #{tpu_custom_call.1} parent=1 // loop_header
      %s23 = sphi 0, %s27
      %p24 = scmp.ge.s32.totalorder %s23, 5
      %s30 = sphi 0, %s42
      %s31 = sphi 0, %s38
      %s32 = sphi 0, %s30
      %s33 = sphi 0, %s31
      %s34 = sphi 0, %s32
      %s35 = sphi 0, %s33
      %s47 = sphi 0, %s49
      %s50 = sphi 0, %s47
      %s51 = sphi 0, %s50
      %s67 = sphi 0, %s51
      %s75 = sphi 0, %s77
      %s78 = sphi 0, %s75
      %s79 = sphi 0, %s78
      %s95 = sphi 0, %s79
    $region4: #{tpu_custom_call.1} parent=1 // loop_header_branch
      %26 = sbr.rel (%p24) target = $region8
    $region5: #{tpu_custom_call.1} parent=1 // loop_body
      %s28 = ssub.s32 %s23, 1
      %s29 = ssub.s32 %s23, 2
      %s36 = sadd.s32 1, %s31
      %p37 = scmp.ge.s32.totalorder %s36, 1
      %s38 = scalar_select %p37, 0, %s36
      %s39 = sadd.s32 1, %s30
      %s40 = scalar_select %p37, %s39, %s30
      %p41 = scmp.ge.s32.totalorder %s40, 3
      %s42 = scalar_select %p41, 0, %s40
      %s43 = ssub.s32 %s30, %s42
      %s44 = ssub.s32 %s31, %s38
      %s45 = sor.u32 %s43, %s44
      %p46 = scmp.eq.s32.totalorder %s45, 0
      %s48 = sadd.s32 %s47, 1
      %s49 = scalar_select %p46, %s47, %s48
      %p52 = pneg %p46
      %p53 = scmp.eq.s32.totalorder %s23, 2
      %p54 = por %p52, %p53
      %p55 = scmp.ne.s32.totalorder %s47, %s50
      %p56 = scmp.eq.s32.totalorder %s23, 0
      %p57 = por %p55, %p56
      %p58 = scmp.ne.s32.totalorder %s47, %s50
      %p59 = scmp.eq.s32.totalorder %s28, 2
      %p60 = por %p58, %p59
      %p61 = scmp.ne.s32.totalorder %s50, %s51
      %p62 = scmp.eq.s32.totalorder %s28, 0
      %p63 = por %p61, %p62
      %p64 = scmp.ne.s32.totalorder %s50, %s51
      %p65 = scmp.eq.s32.totalorder %s29, 2
      %p66 = por %p64, %p65
      %p68 = scmp.ne.s32.totalorder %s51, %s67
      %p69 = scmp.eq.s32.totalorder %s29, 0
      %p70 = por %p68, %p69
      %s71 = ssub.s32 %s30, %s42
      %s72 = ssub.s32 %s31, %s38
      %s73 = sor.u32 %s71, %s72
      %p74 = scmp.eq.s32.totalorder %s73, 0
      %s76 = sadd.s32 %s75, 1
      %s77 = scalar_select %p74, %s75, %s76
      %p80 = pneg %p74
      %p81 = scmp.eq.s32.totalorder %s23, 2
      %p82 = por %p80, %p81
      %p83 = scmp.ne.s32.totalorder %s75, %s78
      %p84 = scmp.eq.s32.totalorder %s23, 0
      %p85 = por %p83, %p84
      %p86 = scmp.ne.s32.totalorder %s75, %s78
      %p87 = scmp.eq.s32.totalorder %s28, 2
      %p88 = por %p86, %p87
      %p89 = scmp.ne.s32.totalorder %s78, %s79
      %p90 = scmp.eq.s32.totalorder %s28, 0
      %p91 = por %p89, %p90
      %p92 = scmp.ne.s32.totalorder %s78, %s79
      %p93 = scmp.eq.s32.totalorder %s29, 2
      %p94 = por %p92, %p93
      %p96 = scmp.ne.s32.totalorder %s79, %s95
      %p97 = scmp.eq.s32.totalorder %s29, 0
      %p98 = por %p96, %p97
      %p99 = scmp.le.s32.totalorder 1, %s23
      %p100 = scmp.lt.s32.totalorder %s23, 4
      %p101 = pnand %p99, %p100
      %p102 = pneg %p101
      // Predicated region
      $region9: #{tpu_custom_call.1} parent=5 // pred_check
        _
      $region10: #{tpu_custom_call.1} parent=5 // pred_check_branch
        %104 = sbr.rel (%p101) target = $region12
      $region11: #{tpu_custom_call.1} parent=5 // pred_region
        %s105 = ssub.s32 %s23, 1
      $region12: #{tpu_custom_call.1} parent=5 // pred_fallthru
        _
      %p106 = scmp.lt.s32.totalorder %s23, 3
      // Predicated region
      $region13: #{tpu_custom_call.1} parent=5 // pred_check
        %p107 = pneg %p106
      $region14: #{tpu_custom_call.1} parent=5 // pred_check_branch
        %109 = sbr.rel (%p107) target = $region16
      $region15: #{tpu_custom_call.1} parent=5 // pred_region
        // Predicated region
        $region17: #{tpu_custom_call.1} parent=15 // pred_check
          %p110 = pneg %p57
        $region18: #{tpu_custom_call.1} parent=15 // pred_check_branch
          %112 = sbr.rel (%p110) target = $region20
        $region19: #{tpu_custom_call.1} parent=15 // pred_region
          %s113 = sand.u32 %s47, 1
          %s114 = scalar_lea.sflag [#allocation6], %s113
          %s115 = sand.u32 %s47, 1
          %s116 = smul.addr %s115, 16
          %s117 = scalar_lea.vmem [#allocation5], %s116
          %s118 = smul.u32 2, %s31
          %s120 = ssub.s32 256, 256
          %121 = vsyncadd %s114, %s120
          %s122 = smul.addr %s30, 2
          %s123 = sadd.s32 %s118, %s122
          %s124 = smul.addr %s123, 128
          %s125 = scalar_lea.hbm %s2, %s124
          %s126 = sshll.u32 %s117, 4
          %s127 = int_to_ptr.vmem [resolvable:$true] %s126
          %132 = dma.hbm_to_vmem [thread:$0]  %s125, 256, %s127, %s114, 128, 128, 8
        $region20: #{tpu_custom_call.1} parent=15 // pred_fallthru
          _
      $region16: #{tpu_custom_call.1} parent=5 // pred_fallthru
        _
      %p133 = scmp.le.s32.totalorder 1, %s23
      %p134 = scmp.lt.s32.totalorder %s23, 4
      %p135 = pnand %p133, %p134
      %p136 = pneg %p135
      // Predicated region
      $region21: #{tpu_custom_call.1} parent=5 // pred_check
        _
      $region22: #{tpu_custom_call.1} parent=5 // pred_check_branch
        %138 = sbr.rel (%p135) target = $region24
      $region23: #{tpu_custom_call.1} parent=5 // pred_region
        %s139 = ssub.s32 %s23, 1
        %s140 = sand.u32 %s50, 1
        %s141 = scalar_lea.sflag [#allocation6], %s140
        %s142 = sand.u32 %s50, 1
        %s143 = smul.addr %s142, 16
        %s144 = scalar_lea.vmem [#allocation5], %s143
        // Predicated region
        $region25: #{tpu_custom_call.1} parent=23 // pred_check
          %p145 = pneg %p63
        $region26: #{tpu_custom_call.1} parent=23 // pred_check_branch
          %147 = sbr.rel (%p145) target = $region28
        $region27: #{tpu_custom_call.1} parent=23 // pred_region
          %148 = dma.done %s141, 256
        $region28: #{tpu_custom_call.1} parent=23 // pred_fallthru
          _
        %s149 = sand.u32 %s50, 1
        %s150 = scalar_lea.sflag [#allocation6], %s149
        %s151 = sand.u32 %s50, 1
        %s152 = smul.addr %s151, 16
        %s153 = scalar_lea.vmem [#allocation5], %s152
        %p154 = pneg %p63
        %p155 = pneg %p60
        %p156 = pneg %p91
        %p157 = pneg %p88
        %s158 = sand.u32 %s78, 1
        %s159 = scalar_lea.sflag [#allocation7], %s158
        %s160 = sand.u32 %s78, 1
        %s161 = smul.addr %s160, 16
        %s162 = scalar_lea.vmem [#allocation8], %s161
        %s163 = smul.u32 2, %s33
        %s164 = smul.u32 2, %s33
        %s165 = sld [smem:[#allocation3 + %s32]]
        %s166 = sld [smem:[#allocation4 + %s32]]
        %v167 = vld [vmem:[%s144] sm:$0xff]
        %v168 = vld [vmem:[%s144 + $0x8] sm:$0xff]
        %v169 = vstv %s165
        %v170 = vmul.f32 %v167, %v169
        %v171 = vmul.f32 %v168, %v169
        %v172 = vstv %s166
        %v173 = vadd.f32 %v170, %v172
        %v174 = vadd.f32 %v171, %v172
        %175 = vst [vmem:[%s162] sm:$0xff] %v173
        %176 = vst [vmem:[%s162 + $0x8] sm:$0xff] %v174
        %s177 = sand.u32 %s78, 1
        %s178 = scalar_lea.sflag [#allocation7], %s177
        %s179 = sand.u32 %s78, 1
        %s180 = smul.addr %s179, 16
        %s181 = scalar_lea.vmem [#allocation8], %s180
        // Predicated region
        $region29: #{tpu_custom_call.1} parent=23 // pred_check
          %p182 = pneg %p88
        $region30: #{tpu_custom_call.1} parent=23 // pred_check_branch
          %184 = sbr.rel (%p182) target = $region32
        $region31: #{tpu_custom_call.1} parent=23 // pred_region
          %s185 = smul.u32 2, %s33
          %s187 = ssub.s32 256, 256
          %188 = vsyncadd %s178, %s187
          %s189 = smul.addr %s32, 2
          %s190 = sadd.s32 %s185, %s189
          %s191 = smul.addr %s190, 128
          %s192 = scalar_lea.hbm %s3, %s191
          %s193 = sshll.u32 %s181, 4
          %s194 = int_to_ptr.vmem [resolvable:$true] %s193
          %199 = dma.vmem_to_hbm [thread:$0]  %s194, 256, %s192, %s178, 128, 128, 8
        $region32: #{tpu_custom_call.1} parent=23 // pred_fallthru
          _
      $region24: #{tpu_custom_call.1} parent=5 // pred_fallthru
        _
      %p200 = scmp.le.s32.totalorder 2, %s23
      // Predicated region
      $region33: #{tpu_custom_call.1} parent=5 // pred_check
        %p201 = pneg %p200
      $region34: #{tpu_custom_call.1} parent=5 // pred_check_branch
        %203 = sbr.rel (%p201) target = $region36
      $region35: #{tpu_custom_call.1} parent=5 // pred_region
        %s204 = ssub.s32 %s23, 2
        // Predicated region
        $region37: #{tpu_custom_call.1} parent=35 // pred_check
          %p205 = pneg %p94
        $region38: #{tpu_custom_call.1} parent=35 // pred_check_branch
          %207 = sbr.rel (%p205) target = $region40
        $region39: #{tpu_custom_call.1} parent=35 // pred_region
          %s208 = sand.u32 %s79, 1
          %s209 = scalar_lea.sflag [#allocation7], %s208
          %s210 = sand.u32 %s79, 1
          %s211 = smul.addr %s210, 16
          %s212 = scalar_lea.vmem [#allocation8], %s211
          %213 = dma.done %s209, 256
        $region40: #{tpu_custom_call.1} parent=35 // pred_fallthru
          _
      $region36: #{tpu_custom_call.1} parent=5 // pred_fallthru
        _
    $region6: #{tpu_custom_call.1} parent=1 // loop_footer
      %s27 = sadd.s32 1, %s23
    $region7: #{tpu_custom_call.1} parent=1 // loop_footer_branch
      %22 = sbr.rel target = $region3
    $region8: #{tpu_custom_call.1} parent=1 // loop_exit
      _
    %214 = vsyncpa [#allocation6], 1
    %s215 = scalar_lea.sflag [#allocation6], 1
    %216 = vsyncpa %s215, 1
    %217 = vsyncpa [#allocation7], 1
    %s218 = scalar_lea.sflag [#allocation7], 1
    %219 = vsyncpa %s218, 1

</llo_original>
